<compile_context>
chip_gen: v7x
topology: tpu7x:2x2x1
jax: 0.10.0
libtpu: 0.0.40
codegen_flags: <defaults>
</compile_context>

<pallas_src>
import jax
import jax.numpy as jnp
from jax.experimental import pallas as pl
from jax.experimental.pallas import tpu as pltpu


def _round_up(x, m):
    return ((x + m - 1) // m) * m


def _mlp_kernel(x_ref, w1_ref, b1_ref, w2_ref, b2_ref, o_ref):
    # fc1 (MXU, f32 accumulation) + bias + leaky_relu (VPU)
    h = jnp.dot(x_ref[...], w1_ref[...], preferred_element_type=jnp.float32)
    h = h + b1_ref[...]                          # (TB, H) + (1, H)
    h = jnp.maximum(h, 0.01 * h)                 # leaky_relu, slope 0.01
    # fc2 (MXU) + bias; store exactly n_choices lanes (no write amplification)
    y = jnp.dot(h, w2_ref[...], preferred_element_type=jnp.float32)
    o_ref[...] = (y + b2_ref[...]).astype(o_ref.dtype)


def executive_sender_forward(x, w1, b1, w2, b2, *, block_b=1024):
    """x: (B, A, F) f32; w1: (A*F, 2*A*F); b1: (2*A*F,); w2: (2*A*F, C); b2: (C,).

    Returns (B, C) f32. Weights are stored (in, out), i.e. transposed vs torch
    nn.Linear.weight -- transpose when porting a torch state dict.
    """
    B, A, F = x.shape
    in_dim = A * F
    hidden = w1.shape[1]
    n_choices = w2.shape[1]
    assert w1.shape == (in_dim, hidden), "w1 must be (A*F, 2*A*F) = fc1.weight.T"
    assert w2.shape == (hidden, n_choices), "w2 must be (2*A*F, C) = fc2.weight.T"
    assert b1.shape == (hidden,) and b2.shape == (n_choices,)

    # flatten(1,2): contiguous trailing-dim collapse -> free metadata reshape.
    x2d = x.reshape(B, in_dim)
    b1r = b1.reshape(1, hidden)
    b2r = b2.reshape(1, n_choices)

    # Batch tile: multiple of 8 sublanes; >= 2 grid steps when B > 8 (v7x megacore).
    # No batch pad: ragged last block is handled (masked) by Pallas.
    block_b = max(8, _round_up(block_b, 8))
    if B <= 8:
        tb = B                                   # single tile == full batch dim (legal)
    else:
        tb = min(block_b, _round_up(pl.cdiv(B, 2), 8))
    grid = (pl.cdiv(B, tb),)

    # Explicit VMEM budget: resident (single-buffered) weights + double-buffered
    # x/out tiles + fc1/fc2 working set, with headroom; clamped to [32, 64] MiB.
    need = 4 * (in_dim * hidden + hidden + hidden * n_choices + n_choices
                + 2 * tb * (in_dim + n_choices) + 2 * tb * hidden)
    vmem_limit = int(min(max(4 * need, 32 * 1024 * 1024), 64 * 1024 * 1024))

    resident = dict(pipeline_mode=pl.Buffered(1))  # grid-invariant: single buffer

    out = pl.pallas_call(
        _mlp_kernel,
        out_shape=jax.ShapeDtypeStruct((B, n_choices), jnp.float32),
        grid=grid,
        in_specs=[
            pl.BlockSpec((tb, in_dim), lambda i: (i, 0)),                 # x marches over B
            pl.BlockSpec((in_dim, hidden), lambda i: (0, 0), **resident),  # w1 resident
            pl.BlockSpec((1, hidden), lambda i: (0, 0), **resident),       # b1 resident
            pl.BlockSpec((hidden, n_choices), lambda i: (0, 0), **resident),  # w2 resident
            pl.BlockSpec((1, n_choices), lambda i: (0, 0), **resident),    # b2 resident
        ],
        out_specs=pl.BlockSpec((tb, n_choices), lambda i: (i, 0)),
        compiler_params=pltpu.CompilerParams(
            dimension_semantics=("parallel",),   # shard batch tiles across TCs (v7x)
            allow_input_fusion=[True, False, False, False, False],
            vmem_limit_bytes=vmem_limit,
        ),
        cost_estimate=pl.CostEstimate(
            flops=2 * B * (in_dim * hidden + hidden * n_choices),
            transcendentals=0,
            bytes_accessed=4 * (B * in_dim + in_dim * hidden + hidden
                                + hidden * n_choices + n_choices + B * n_choices),
        ),
    )(x2d, w1, b1r, w2, b2r)

    return out   # already exactly (B, n_choices); no post-kernel slice needed


def init_params(key, n_choices, n_features, n_attributes):
    """Deterministic init matching nn.Linear fan-in bounds; weights stored (in, out)."""
    in1 = n_attributes * n_features
    out1 = in1 * 2
    k1, k2, k3, k4 = jax.random.split(key, 4)
    lim1 = 1.0 / jnp.sqrt(in1)
    lim2 = 1.0 / jnp.sqrt(out1)
    w1 = jax.random.uniform(k1, (in1, out1), jnp.float32, -lim1, lim1)
    b1 = jax.random.uniform(k2, (out1,), jnp.float32, -lim1, lim1)
    w2 = jax.random.uniform(k3, (out1, n_choices), jnp.float32, -lim2, lim2)
    b2 = jax.random.uniform(k4, (n_choices,), jnp.float32, -lim2, lim2)
    return w1, b1, w2, b2


if __name__ == "__main__":
    # Module-consistent small shapes: in_dim = 4*8 = 32, hidden = 64, choices = 16.
    n_choices, n_features, n_attributes = 16, 8, 4

    key = jax.random.PRNGKey(0)
    kx, kp = jax.random.split(key)
    w1, b1, w2, b2 = init_params(kp, n_choices, n_features, n_attributes)

    def reference(xin):
        x2d = xin.reshape(xin.shape[0], -1)
        h = x2d @ w1 + b1
        h = jnp.where(h > 0, h, 0.01 * h)
        return h @ w2 + b2

    # batch=16: even 2-step grid (tb=8). batch=19: ragged last block (tb=16, masked).
    for batch in (16, 19):
        xk = jax.random.fold_in(kx, batch)
        x = jax.random.normal(xk, (batch, n_attributes, n_features), jnp.float32)
        out = jax.block_until_ready(executive_sender_forward(x, w1, b1, w2, b2))
        y_ref = reference(x)
        assert out.shape == (batch, n_choices)
        assert jnp.allclose(out, y_ref, atol=1e-5, rtol=1e-5)

    print("KERNEL_OK")
</pallas_src>

<mosaic_0001>
module attributes {stable_mosaic.version = 11 : i64} {
  func.func @_mlp_kernel(%arg0: i32, %arg1: memref<8x32xf32, #tpu.memory_space<vmem>>, %arg2: memref<32x64xf32, #tpu.memory_space<vmem>>, %arg3: memref<1x64xf32, #tpu.memory_space<vmem>>, %arg4: memref<64x16xf32, #tpu.memory_space<vmem>>, %arg5: memref<1x16xf32, #tpu.memory_space<vmem>>, %arg6: memref<8x16xf32, #tpu.memory_space<vmem>>) attributes {dimension_semantics = [#tpu.dimension_semantics<parallel>], iteration_bounds = array<i64: 2>, scalar_prefetch = 0 : i64, scratch_operands = 0 : i64, tpu.core_type = #tpu.core_type<tc>, window_params = [{transform_indices = @transform_0, window_bounds = array<i64: 8, 32>}, {pipeline_mode = #tpu.pipeline_mode<synchronous>, transform_indices = @transform_1, window_bounds = array<i64: 32, 64>}, {pipeline_mode = #tpu.pipeline_mode<synchronous>, transform_indices = @transform_2, window_bounds = array<i64: 1, 64>}, {pipeline_mode = #tpu.pipeline_mode<synchronous>, transform_indices = @transform_3, window_bounds = array<i64: 64, 16>}, {pipeline_mode = #tpu.pipeline_mode<synchronous>, transform_indices = @transform_4, window_bounds = array<i64: 1, 16>}, {transform_indices = @transform_5, window_bounds = array<i64: 8, 16>}]} {
    %c0 = arith.constant 0 : index
    %c0_0 = arith.constant 0 : index
    %0 = vector.load %arg1[%c0, %c0_0] : memref<8x32xf32, #tpu.memory_space<vmem>>, vector<8x32xf32>
    %c0_1 = arith.constant 0 : index
    %c0_2 = arith.constant 0 : index
    %1 = vector.load %arg2[%c0_1, %c0_2] : memref<32x64xf32, #tpu.memory_space<vmem>>, vector<32x64xf32>
    %cst = arith.constant dense<0.000000e+00> : vector<8x64xf32>
    %2 = tpu.matmul %0, %1, %cst {dimension_numbers = #tpu.dot_dimension_numbers<[1], [0], [0], [1], [0, 0, 1, 1], [], []>} : vector<8x32xf32>, vector<32x64xf32>, vector<8x64xf32> -> vector<8x64xf32>
    %c0_3 = arith.constant 0 : index
    %c0_4 = arith.constant 0 : index
    %3 = vector.load %arg3[%c0_3, %c0_4] : memref<1x64xf32, #tpu.memory_space<vmem>>, vector<1x64xf32>
    %4 = vector.broadcast %3 : vector<1x64xf32> to vector<8x64xf32>
    %5 = arith.addf %2, %4 : vector<8x64xf32>
    %cst_5 = arith.constant 0.00999999977 : f32
    %6 = vector.broadcast %cst_5 : f32 to vector<8x64xf32>
    %7 = arith.mulf %6, %5 : vector<8x64xf32>
    %8 = arith.maximumf %5, %7 : vector<8x64xf32>
    %c0_6 = arith.constant 0 : index
    %c0_7 = arith.constant 0 : index
    %9 = vector.load %arg4[%c0_6, %c0_7] : memref<64x16xf32, #tpu.memory_space<vmem>>, vector<64x16xf32>
    %cst_8 = arith.constant dense<0.000000e+00> : vector<8x16xf32>
    %10 = tpu.matmul %8, %9, %cst_8 {dimension_numbers = #tpu.dot_dimension_numbers<[1], [0], [0], [1], [0, 0, 1, 1], [], []>} : vector<8x64xf32>, vector<64x16xf32>, vector<8x16xf32> -> vector<8x16xf32>
    %c0_9 = arith.constant 0 : index
    %c0_10 = arith.constant 0 : index
    %11 = vector.load %arg5[%c0_9, %c0_10] : memref<1x16xf32, #tpu.memory_space<vmem>>, vector<1x16xf32>
    %12 = vector.broadcast %11 : vector<1x16xf32> to vector<8x16xf32>
    %13 = arith.addf %10, %12 : vector<8x16xf32>
    %c0_11 = arith.constant 0 : index
    %c0_12 = arith.constant 0 : index
    %14 = vector.load %arg6[%c0_11, %c0_12] : memref<8x16xf32, #tpu.memory_space<vmem>>, vector<8x16xf32>
    tpu.vector_store %arg6[%c0_11, %c0_12], %13 {strides = array<i32>} : memref<8x16xf32, #tpu.memory_space<vmem>>, vector<8x16xf32>,
    return
  }
  func.func @transform_0(%arg0: i32) -> (i32, i32) {
    %c0_i32 = arith.constant 0 : i32
    %c0_i32_0 = arith.constant 0 : i32
    return %arg0, %c0_i32 : i32, i32
  }
  func.func @transform_1(%arg0: i32) -> (i32, i32) {
    %c0_i32 = arith.constant 0 : i32
    %c0_i32_0 = arith.constant 0 : i32
    %c0_i32_1 = arith.constant 0 : i32
    return %c0_i32, %c0_i32_0 : i32, i32
  }
  func.func @transform_2(%arg0: i32) -> (i32, i32) {
    %c0_i32 = arith.constant 0 : i32
    %c0_i32_0 = arith.constant 0 : i32
    %c0_i32_1 = arith.constant 0 : i32
    return %c0_i32, %c0_i32_0 : i32, i32
  }
  func.func @transform_3(%arg0: i32) -> (i32, i32) {
    %c0_i32 = arith.constant 0 : i32
    %c0_i32_0 = arith.constant 0 : i32
    %c0_i32_1 = arith.constant 0 : i32
    return %c0_i32, %c0_i32_0 : i32, i32
  }
  func.func @transform_4(%arg0: i32) -> (i32, i32) {
    %c0_i32 = arith.constant 0 : i32
    %c0_i32_0 = arith.constant 0 : i32
    %c0_i32_1 = arith.constant 0 : i32
    return %c0_i32, %c0_i32_0 : i32, i32
  }
  func.func @transform_5(%arg0: i32) -> (i32, i32) {
    %c0_i32 = arith.constant 0 : i32
    %c0_i32_0 = arith.constant 0 : i32
    return %arg0, %c0_i32 : i32, i32
  }
}

</mosaic_0001>

<llo_original>
// kernel: tpu_custom_call.1
$region0: #{tpu_custom_call.1}
  #allocation0 [shape = 'u32[]', space=smem, size = 0x4, offset = 0x4, fixed_abs, tag = 'smem constant byte address 0x4 - core index']
  #allocation1 [shape = 'u32[144,128]{1,0:T(1,128)}', space=vmem, size = 0x12000, scoped, tag = 'internal scratch']
  %s0 = inlined_call_operand.vmem [shape: f32[16,32], index: 0, kind: input, shape index: {}]
  %s1 = inlined_call_operand.vmem [shape: f32[32,64], index: 1, kind: input, shape index: {}]
  %s2 = inlined_call_operand.vmem [shape: f32[1,64], index: 2, kind: input, shape index: {}]
  %s3 = inlined_call_operand.vmem [shape: f32[64,16], index: 3, kind: input, shape index: {}]
  %s4 = inlined_call_operand.vmem [shape: f32[1,16], index: 4, kind: input, shape index: {}]
  %s5 = inlined_call_operand.hbm [shape: f32[16,16], index: 5, kind: output, shape index: {}]
  %s6 = sld [smem:[#allocation0]]
  $region53: #{tpu_custom_call.1} parent=0
    _
  %s8 = ssub.s32 1, %s6
  %s9 = scalar_select 0, %s8, %s6
  $region1: #{tpu_custom_call.1} parent=0
    #allocation2 [shape = 'u8[8192]{0}', space=vmem, size = 0x2000, scoped, tag = 'output window, operand 0']
    #allocation3 [shape = 's32[2]{0}', space=sflag, size = 0x8, scoped, tag = 'scoped memory for tpu_custom_call.1']
    %10 = vsyncpa [#allocation3], 0
    %s11 = scalar_lea.sflag [#allocation3], 1
    %12 = vsyncpa %s11, 0
    loop: start=0, step=1, limit=4
    $region2: #{tpu_custom_call.1} parent=1 // loop_pre_header
      _
    $region3: #{tpu_custom_call.1} parent=1 // loop_header
      %s14 = sphi 0, %s18
      %p15 = scmp.ge.s32.totalorder %s14, 4
      %s24 = sphi 0, %s26
      %s27 = sphi 0, %s24
      %s28 = sphi 0, %s27
      %s44 = sphi 0, %s28
      %s48 = sphi 0, %s48
      %s50 = sphi 0, %s48
      %s51 = sphi 0, %s50
      %s65 = sphi 0, %s51
      %s69 = sphi 0, %s69
      %s71 = sphi 0, %s69
      %s72 = sphi 0, %s71
      %s86 = sphi 0, %s72
      %s90 = sphi 0, %s90
      %s92 = sphi 0, %s90
      %s93 = sphi 0, %s92
      %s107 = sphi 0, %s93
      %s111 = sphi 0, %s111
      %s113 = sphi 0, %s111
      %s114 = sphi 0, %s113
      %s128 = sphi 0, %s114
      %s134 = sphi 0, %s136
      %s137 = sphi 0, %s134
      %s138 = sphi 0, %s137
      %s154 = sphi 0, %s138
    $region4: #{tpu_custom_call.1} parent=1 // loop_header_branch
      %17 = sbr.rel (%p15) target = $region8
    $region5: #{tpu_custom_call.1} parent=1 // loop_body
      %s19 = ssub.s32 %s14, 1
      %s20 = ssub.s32 %s14, 2
      %s21 = sadd.s32 %s14, 1
      %s22 = ssub.s32 %s14, %s21
      %p23 = scmp.eq.s32.totalorder %s22, 0
      %s25 = sadd.s32 %s24, 1
      %s26 = scalar_select %p23, %s24, %s25
      %p29 = pneg %p23
      %p30 = scmp.eq.s32.totalorder %s14, 1
      %p31 = por %p29, %p30
      %p32 = scmp.ne.s32.totalorder %s24, %s27
      %p33 = scmp.eq.s32.totalorder %s14, 0
      %p34 = por %p32, %p33
      %p35 = scmp.ne.s32.totalorder %s24, %s27
      %p36 = scmp.eq.s32.totalorder %s19, 1
      %p37 = por %p35, %p36
      %p38 = scmp.ne.s32.totalorder %s27, %s28
      %p39 = scmp.eq.s32.totalorder %s19, 0
      %p40 = por %p38, %p39
      %p41 = scmp.ne.s32.totalorder %s27, %s28
      %p42 = scmp.eq.s32.totalorder %s20, 1
      %p43 = por %p41, %p42
      %p45 = scmp.ne.s32.totalorder %s28, %s44
      %p46 = scmp.eq.s32.totalorder %s20, 0
      %p47 = por %p45, %p46
      %s49 = sadd.s32 %s48, 1
      %p52 = scmp.eq.s32.totalorder %s14, 1
      %p53 = scmp.ne.s32.totalorder %s48, %s50
      %p54 = scmp.eq.s32.totalorder %s14, 0
      %p55 = por %p53, %p54
      %p56 = scmp.ne.s32.totalorder %s48, %s50
      %p57 = scmp.eq.s32.totalorder %s19, 1
      %p58 = por %p56, %p57
      %p59 = scmp.ne.s32.totalorder %s50, %s51
      %p60 = scmp.eq.s32.totalorder %s19, 0
      %p61 = por %p59, %p60
      %p62 = scmp.ne.s32.totalorder %s50, %s51
      %p63 = scmp.eq.s32.totalorder %s20, 1
      %p64 = por %p62, %p63
      %p66 = scmp.ne.s32.totalorder %s51, %s65
      %p67 = scmp.eq.s32.totalorder %s20, 0
      %p68 = por %p66, %p67
      %s70 = sadd.s32 %s69, 1
      %p73 = scmp.eq.s32.totalorder %s14, 1
      %p74 = scmp.ne.s32.totalorder %s69, %s71
      %p75 = scmp.eq.s32.totalorder %s14, 0
      %p76 = por %p74, %p75
      %p77 = scmp.ne.s32.totalorder %s69, %s71
      %p78 = scmp.eq.s32.totalorder %s19, 1
      %p79 = por %p77, %p78
      %p80 = scmp.ne.s32.totalorder %s71, %s72
      %p81 = scmp.eq.s32.totalorder %s19, 0
      %p82 = por %p80, %p81
      %p83 = scmp.ne.s32.totalorder %s71, %s72
      %p84 = scmp.eq.s32.totalorder %s20, 1
      %p85 = por %p83, %p84
      %p87 = scmp.ne.s32.totalorder %s72, %s86
      %p88 = scmp.eq.s32.totalorder %s20, 0
      %p89 = por %p87, %p88
      %s91 = sadd.s32 %s90, 1
      %p94 = scmp.eq.s32.totalorder %s14, 1
      %p95 = scmp.ne.s32.totalorder %s90, %s92
      %p96 = scmp.eq.s32.totalorder %s14, 0
      %p97 = por %p95, %p96
      %p98 = scmp.ne.s32.totalorder %s90, %s92
      %p99 = scmp.eq.s32.totalorder %s19, 1
      %p100 = por %p98, %p99
      %p101 = scmp.ne.s32.totalorder %s92, %s93
      %p102 = scmp.eq.s32.totalorder %s19, 0
      %p103 = por %p101, %p102
      %p104 = scmp.ne.s32.totalorder %s92, %s93
      %p105 = scmp.eq.s32.totalorder %s20, 1
      %p106 = por %p104, %p105
      %p108 = scmp.ne.s32.totalorder %s93, %s107
      %p109 = scmp.eq.s32.totalorder %s20, 0
      %p110 = por %p108, %p109
      %s112 = sadd.s32 %s111, 1
      %p115 = scmp.eq.s32.totalorder %s14, 1
      %p116 = scmp.ne.s32.totalorder %s111, %s113
      %p117 = scmp.eq.s32.totalorder %s14, 0
      %p118 = por %p116, %p117
      %p119 = scmp.ne.s32.totalorder %s111, %s113
      %p120 = scmp.eq.s32.totalorder %s19, 1
      %p121 = por %p119, %p120
      %p122 = scmp.ne.s32.totalorder %s113, %s114
      %p123 = scmp.eq.s32.totalorder %s19, 0
      %p124 = por %p122, %p123
      %p125 = scmp.ne.s32.totalorder %s113, %s114
      %p126 = scmp.eq.s32.totalorder %s20, 1
      %p127 = por %p125, %p126
      %p129 = scmp.ne.s32.totalorder %s114, %s128
      %p130 = scmp.eq.s32.totalorder %s20, 0
      %p131 = por %p129, %p130
      %s132 = ssub.s32 %s14, %s21
      %p133 = scmp.eq.s32.totalorder %s132, 0
      %s135 = sadd.s32 %s134, 1
      %s136 = scalar_select %p133, %s134, %s135
      %p139 = pneg %p133
      %p140 = scmp.eq.s32.totalorder %s14, 1
      %p141 = por %p139, %p140
      %p142 = scmp.ne.s32.totalorder %s134, %s137
      %p143 = scmp.eq.s32.totalorder %s14, 0
      %p144 = por %p142, %p143
      %p145 = scmp.ne.s32.totalorder %s134, %s137
      %p146 = scmp.eq.s32.totalorder %s19, 1
      %p147 = por %p145, %p146
      %p148 = scmp.ne.s32.totalorder %s137, %s138
      %p149 = scmp.eq.s32.totalorder %s19, 0
      %p150 = por %p148, %p149
      %p151 = scmp.ne.s32.totalorder %s137, %s138
      %p152 = scmp.eq.s32.totalorder %s20, 1
      %p153 = por %p151, %p152
      %p155 = scmp.ne.s32.totalorder %s138, %s154
      %p156 = scmp.eq.s32.totalorder %s20, 0
      %p157 = por %p155, %p156
      %p158 = scmp.le.s32.totalorder 1, %s14
      %p159 = scmp.lt.s32.totalorder %s14, 3
      %p160 = pnand %p158, %p159
      %p161 = pneg %p160
      // Predicated region
      $region9: #{tpu_custom_call.1} parent=5 // pred_check
        _
      $region10: #{tpu_custom_call.1} parent=5 // pred_check_branch
        %163 = sbr.rel (%p160) target = $region12
      $region11: #{tpu_custom_call.1} parent=5 // pred_region
        %s164 = ssub.s32 %s14, 1
        // Predicated region
        $region13: #{tpu_custom_call.1} parent=11 // pred_check
          %p165 = pneg %p61
        $region14: #{tpu_custom_call.1} parent=11 // pred_check_branch
          %167 = sbr.rel (%p165) target = $region16
        $region15: #{tpu_custom_call.1} parent=11 // pred_region
          _
        $region16: #{tpu_custom_call.1} parent=11 // pred_fallthru
          _
        // Predicated region
        $region17: #{tpu_custom_call.1} parent=11 // pred_check
          %p168 = pneg %p82
        $region18: #{tpu_custom_call.1} parent=11 // pred_check_branch
          %170 = sbr.rel (%p168) target = $region20
        $region19: #{tpu_custom_call.1} parent=11 // pred_region
          _
        $region20: #{tpu_custom_call.1} parent=11 // pred_fallthru
          _
        // Predicated region
        $region21: #{tpu_custom_call.1} parent=11 // pred_check
          %p171 = pneg %p103
        $region22: #{tpu_custom_call.1} parent=11 // pred_check_branch
          %173 = sbr.rel (%p171) target = $region24
        $region23: #{tpu_custom_call.1} parent=11 // pred_region
          _
        $region24: #{tpu_custom_call.1} parent=11 // pred_fallthru
          _
        // Predicated region
        $region25: #{tpu_custom_call.1} parent=11 // pred_check
          %p174 = pneg %p124
        $region26: #{tpu_custom_call.1} parent=11 // pred_check_branch
          %176 = sbr.rel (%p174) target = $region28
        $region27: #{tpu_custom_call.1} parent=11 // pred_region
          _
        $region28: #{tpu_custom_call.1} parent=11 // pred_fallthru
          _
      $region12: #{tpu_custom_call.1} parent=5 // pred_fallthru
        _
      %p177 = scmp.lt.s32.totalorder %s14, 2
      // Predicated region
      $region29: #{tpu_custom_call.1} parent=5 // pred_check
        %p178 = pneg %p177
      $region30: #{tpu_custom_call.1} parent=5 // pred_check_branch
        %180 = sbr.rel (%p178) target = $region32
      $region31: #{tpu_custom_call.1} parent=5 // pred_region
        // Predicated region
        $region33: #{tpu_custom_call.1} parent=31 // pred_check
          %p181 = pneg %p34
        $region34: #{tpu_custom_call.1} parent=31 // pred_check_branch
          %183 = sbr.rel (%p181) target = $region36
        $region35: #{tpu_custom_call.1} parent=31 // pred_region
          %p184 = scmp.lt.s32.totalorder %s14, 1
          %s185 = scalar_select %p184, %s14, 1
          %s186 = smul.addr %s185, 8
          %s187 = scalar_lea.vmem %s0, %s186
        $region36: #{tpu_custom_call.1} parent=31 // pred_fallthru
          _
      $region32: #{tpu_custom_call.1} parent=5 // pred_fallthru
        _
      %p188 = scmp.le.s32.totalorder 1, %s14
      %p189 = scmp.lt.s32.totalorder %s14, 3
      %p190 = pnand %p188, %p189
      %p191 = pneg %p190
      // Predicated region
      $region37: #{tpu_custom_call.1} parent=5 // pred_check
        _
      $region38: #{tpu_custom_call.1} parent=5 // pred_check_branch
        %193 = sbr.rel (%p190) target = $region40
      $region39: #{tpu_custom_call.1} parent=5 // pred_region
        %s194 = ssub.s32 %s14, 1
        %p195 = scmp.lt.s32.totalorder %s19, 1
        %s196 = scalar_select %p195, %s19, 1
        %s197 = smul.addr %s196, 8
        %s198 = scalar_lea.vmem %s0, %s197
        %p199 = pneg %p40
        %p200 = pneg %p37
        %p201 = pneg %p61
        %p202 = pneg %p58
        %p203 = pneg %p82
        %p204 = pneg %p79
        %p205 = pneg %p103
        %p206 = pneg %p100
        %p207 = pneg %p124
        %p208 = pneg %p121
        %p209 = pneg %p150
        %p210 = pneg %p147
        %s211 = sand.u32 %s137, 1
        %s212 = scalar_lea.sflag [#allocation3], %s211
        %s213 = sand.u32 %s137, 1
        %s214 = smul.addr %s213, 8
        %s215 = scalar_lea.vmem [#allocation2], %s214
        %p216 = scmp.lt.s32.totalorder %s19, 1
        %s217 = scalar_select %p216, %s19, 1
        %s218 = smul.addr %s217, 8
        %s219 = scalar_lea.vmem %s0, %s218
        %v220 = vld [vmem:[%s219] sm:$0xff]
        %v221 = vld [vmem:[%s1] sm:$0xff]
        %v222 = vld [vmem:[%s1 + $0x8] sm:$0xff]
        %v223 = vld [vmem:[%s1 + $0x10] sm:$0xff]
        %v224 = vld [vmem:[%s1 + $0x18] sm:$0xff]
        %v225 = vld [vmem:[%s2] sm:$0x1]
        %v227 = vlaneseq
        %v228 = vshrl.u32 %v227, 7
        %v229 = vsub.s32 0, %v228
        %v230 = vrot.slane %v225, %v229
        %vm232 = vcmask 261120
        %v234 = vsel %vm232, %v220, 0
        %236 = vmatprep.subr.mxu0 0.0
        %237 = vmatpush1.msra.mxu0 %v221
        %238 = vmatprep.subr.mxu0 0.0
        %239 = vmatpush1.msra.mxu0 %v222
        %240 = vmatprep.subr.mxu0 0.0
        %241 = vmatpush1.msra.mxu0 %v223
        %242 = vmatprep.subr.mxu0 0.0
        %243 = vmatpush1.msra.mxu0 %v224
        %244 = vmatprep.subr.mxu0 0.0
        %245 = vmatpush1.msra.mxu0 0.0
        %246 = vmatprep.subr.mxu0 0.0
        %247 = vmatpush1.msra.mxu0 0.0
        %248 = vmatprep.subr.mxu0 0.0
        %249 = vmatpush1.msra.mxu0 0.0
        %250 = vmatprep.subr.mxu0 0.0
        %251 = vmatpush1.msra.mxu0 0.0
        %252 = vmatprep.subr.mxu0 0.0
        %253 = vmatpush1.msra.mxu0 0.0
        %254 = vmatprep.subr.mxu0 0.0
        %255 = vmatpush1.msra.mxu0 0.0
        %256 = vmatprep.subr.mxu0 0.0
        %257 = vmatpush1.msra.mxu0 0.0
        %258 = vmatprep.subr.mxu0 0.0
        %259 = vmatpush1.msra.mxu0 0.0
        %260 = vmatprep.subr.mxu0 0.0
        %261 = vmatpush1.msra.mxu0 0.0
        %262 = vmatprep.subr.mxu0 0.0
        %263 = vmatpush1.msra.mxu0 0.0
        %264 = vmatprep.subr.mxu0 0.0
        %265 = vmatpush1.msra.mxu0 0.0
        %266 = vmatprep.subr.mxu0 0.0
        %267 = vmatpush1.msra.mxu0 0.0
        %268 = vmatprep.subr.mxu0 0.0
        %269 = vmatpush1.msra.mxu0 0.0
        %270 = vmatprep.subr.mxu0 0.0
        %271 = vmatpush1.msra.mxu0 0.0
        %272 = vmatprep.subr.mxu0 0.0
        %273 = vmatpush1.msra.mxu0 0.0
        %274 = vmatprep.subr.mxu0 0.0
        %275 = vmatpush1.msra.mxu0 0.0
        %276 = vmatprep.subr.mxu0 0.0
        %277 = vmatpush1.msra.mxu0 0.0
        %278 = vmatprep.subr.mxu0 0.0
        %279 = vmatpush1.msra.mxu0 0.0
        %280 = vmatprep.subr.mxu0 0.0
        %281 = vmatpush1.msra.mxu0 0.0
        %282 = vmatprep.subr.mxu0 0.0
        %283 = vmatpush1.msra.mxu0 0.0
        %284 = vmatprep.subr.mxu0 0.0
        %285 = vmatpush1.msra.mxu0 0.0
        %286 = vmatprep.subr.mxu0 0.0
        %287 = vmatpush1.msra.mxu0 0.0
        %288 = vmatprep.subr.mxu0 0.0
        %289 = vmatpush1.msra.mxu0 0.0
        %290 = vmatprep.subr.mxu0 0.0
        %291 = vmatpush1.msra.mxu0 0.0
        %292 = vmatprep.subr.mxu0 0.0
        %293 = vmatpush1.msra.mxu0 0.0
        %294 = vmatprep.subr.mxu0 0.0
        %295 = vmatpush1.msra.mxu0 0.0
        %296 = vmatprep.subr.mxu0 0.0
        %297 = vmatpush1.msra.mxu0 0.0
        %298 = vmatprep.subr.mxu0 0.0
        %299 = vmatpush1.msra.mxu0 0.0
        %300 = vmatprep.mubr.f32.mxu0 0.0
        %301 = vmatmul.mubr.f32.gmra.mrb[0].mxu0 %v234
        %v302 = vpop.f32.mrb[0].mxu0
        %v303 = vadd.f32 %v230, %v302
        %v304 = vpop.f32.mrb[0].mxu0
        %305 = vdwg.mxu0
        %v306 = vmul.f32 %v303, 0.01
        %v307 = vmax.f32 %v303, %v306
        %v308 = vld [vmem:[%s3] sm:$0xff]
        %v309 = vld [vmem:[%s3 + $0x8] sm:$0xff]
        %v310 = vld [vmem:[%s3 + $0x10] sm:$0xff]
        %v311 = vld [vmem:[%s3 + $0x18] sm:$0xff]
        %v312 = vld [vmem:[%s3 + $0x20] sm:$0xff]
        %v313 = vld [vmem:[%s3 + $0x28] sm:$0xff]
        %v314 = vld [vmem:[%s3 + $0x30] sm:$0xff]
        %v315 = vld [vmem:[%s3 + $0x38] sm:$0xff]
        %v316 = vld [vmem:[%s4] sm:$0x1]
        %v318 = vlaneseq
        %v319 = vshrl.u32 %v318, 7
        %v320 = vsub.s32 0, %v319
        %v321 = vrot.slane %v316, %v320
        %vm323 = vcmask 523264
        %v325 = vsel %vm323, %v307, 0
        %327 = vmatprep.subr.mxu0 0.0
        %328 = vmatpush1.msra.mxu0 %v308
        %329 = vmatprep.subr.mxu0 0.0
        %330 = vmatpush1.msra.mxu0 %v309
        %331 = vmatprep.subr.mxu0 0.0
        %332 = vmatpush1.msra.mxu0 %v310
        %333 = vmatprep.subr.mxu0 0.0
        %334 = vmatpush1.msra.mxu0 %v311
        %335 = vmatprep.subr.mxu0 0.0
        %336 = vmatpush1.msra.mxu0 %v312
        %337 = vmatprep.subr.mxu0 0.0
        %338 = vmatpush1.msra.mxu0 %v313
        %339 = vmatprep.subr.mxu0 0.0
        %340 = vmatpush1.msra.mxu0 %v314
        %341 = vmatprep.subr.mxu0 0.0
        %342 = vmatpush1.msra.mxu0 %v315
        %343 = vmatprep.subr.mxu0 0.0
        %344 = vmatpush1.msra.mxu0 0.0
        %345 = vmatprep.subr.mxu0 0.0
        %346 = vmatpush1.msra.mxu0 0.0
        %347 = vmatprep.subr.mxu0 0.0
        %348 = vmatpush1.msra.mxu0 0.0
        %349 = vmatprep.subr.mxu0 0.0
        %350 = vmatpush1.msra.mxu0 0.0
        %351 = vmatprep.subr.mxu0 0.0
        %352 = vmatpush1.msra.mxu0 0.0
        %353 = vmatprep.subr.mxu0 0.0
        %354 = vmatpush1.msra.mxu0 0.0
        %355 = vmatprep.subr.mxu0 0.0
        %356 = vmatpush1.msra.mxu0 0.0
        %357 = vmatprep.subr.mxu0 0.0
        %358 = vmatpush1.msra.mxu0 0.0
        %359 = vmatprep.subr.mxu0 0.0
        %360 = vmatpush1.msra.mxu0 0.0
        %361 = vmatprep.subr.mxu0 0.0
        %362 = vmatpush1.msra.mxu0 0.0
        %363 = vmatprep.subr.mxu0 0.0
        %364 = vmatpush1.msra.mxu0 0.0
        %365 = vmatprep.subr.mxu0 0.0
        %366 = vmatpush1.msra.mxu0 0.0
        %367 = vmatprep.subr.mxu0 0.0
        %368 = vmatpush1.msra.mxu0 0.0
        %369 = vmatprep.subr.mxu0 0.0
        %370 = vmatpush1.msra.mxu0 0.0
        %371 = vmatprep.subr.mxu0 0.0
        %372 = vmatpush1.msra.mxu0 0.0
        %373 = vmatprep.subr.mxu0 0.0
        %374 = vmatpush1.msra.mxu0 0.0
        %375 = vmatprep.subr.mxu0 0.0
        %376 = vmatpush1.msra.mxu0 0.0
        %377 = vmatprep.subr.mxu0 0.0
        %378 = vmatpush1.msra.mxu0 0.0
        %379 = vmatprep.subr.mxu0 0.0
        %380 = vmatpush1.msra.mxu0 0.0
        %381 = vmatprep.subr.mxu0 0.0
        %382 = vmatpush1.msra.mxu0 0.0
        %383 = vmatprep.subr.mxu0 0.0
        %384 = vmatpush1.msra.mxu0 0.0
        %385 = vmatprep.subr.mxu0 0.0
        %386 = vmatpush1.msra.mxu0 0.0
        %387 = vmatprep.subr.mxu0 0.0
        %388 = vmatpush1.msra.mxu0 0.0
        %389 = vmatprep.subr.mxu0 0.0
        %390 = vmatpush1.msra.mxu0 0.0
        %391 = vmatprep.mubr.f32.mxu0 0.0
        %392 = vmatmul.mubr.f32.gmra.mrb[0].mxu0 %v325
        %v393 = vpop.f32.mrb[0].mxu0
        %v394 = vadd.f32 %v321, %v393
        %v395 = vpop.f32.mrb[0].mxu0
        %396 = vdwg.mxu0
        %vm397 = vcmask 130048
        %398 = vst.msk [vmem:[%s215] sm:$0xff] %vm397, %v394
        %s399 = sand.u32 %s137, 1
        %s400 = scalar_lea.sflag [#allocation3], %s399
        %s401 = sand.u32 %s137, 1
        %s402 = smul.addr %s401, 8
        %s403 = scalar_lea.vmem [#allocation2], %s402
        // Predicated region
        $region41: #{tpu_custom_call.1} parent=39 // pred_check
          %p404 = pneg %p147
        $region42: #{tpu_custom_call.1} parent=39 // pred_check_branch
          %406 = sbr.rel (%p404) target = $region44
        $region43: #{tpu_custom_call.1} parent=39 // pred_region
          %s408 = ssub.s32 128, 128
          %409 = vsyncadd %s400, %s408
          %s410 = smul.addr %s19, 128
          %s411 = scalar_lea.hbm %s5, %s410
          %s413 = sshll.u32 %s403, 4
          %s414 = int_to_ptr.vmem [resolvable:$true] %s413
          %416 = dma.vmem_to_hbm [thread:$0]  %s414, 128, %s411, %s400
        $region44: #{tpu_custom_call.1} parent=39 // pred_fallthru
          _
      $region40: #{tpu_custom_call.1} parent=5 // pred_fallthru
        _
      %p417 = scmp.le.s32.totalorder 2, %s14
      // Predicated region
      $region45: #{tpu_custom_call.1} parent=5 // pred_check
        %p418 = pneg %p417
      $region46: #{tpu_custom_call.1} parent=5 // pred_check_branch
        %420 = sbr.rel (%p418) target = $region48
      $region47: #{tpu_custom_call.1} parent=5 // pred_region
        %s421 = ssub.s32 %s14, 2
        // Predicated region
        $region49: #{tpu_custom_call.1} parent=47 // pred_check
          %p422 = pneg %p153
        $region50: #{tpu_custom_call.1} parent=47 // pred_check_branch
          %424 = sbr.rel (%p422) target = $region52
        $region51: #{tpu_custom_call.1} parent=47 // pred_region
          %s425 = sand.u32 %s138, 1
          %s426 = scalar_lea.sflag [#allocation3], %s425
          %s427 = sand.u32 %s138, 1
          %s428 = smul.addr %s427, 8
          %s429 = scalar_lea.vmem [#allocation2], %s428
          %430 = dma.done %s426, 128
        $region52: #{tpu_custom_call.1} parent=47 // pred_fallthru
          _
      $region48: #{tpu_custom_call.1} parent=5 // pred_fallthru
        _
    $region6: #{tpu_custom_call.1} parent=1 // loop_footer
      %s18 = sadd.s32 1, %s14
    $region7: #{tpu_custom_call.1} parent=1 // loop_footer_branch
      %13 = sbr.rel target = $region3
    $region8: #{tpu_custom_call.1} parent=1 // loop_exit
      _
    %431 = vsyncpa [#allocation3], 1
    %s432 = scalar_lea.sflag [#allocation3], 1
    %433 = vsyncpa %s432, 1

</llo_original>
